<compile_context>
chip_gen: v5e
topology: v5e:2x2
jax: 0.10.0
libtpu: 0.0.40
codegen_flags: <defaults>
</compile_context>

<pallas_src>
import jax
import jax.numpy as jnp
from jax import lax
from jax.experimental import pallas as pl
from jax.experimental.pallas import tpu as pltpu


# ----------------------------- configuration -----------------------------
class Cfg:
    MFB_K = 4
    MFB_O = 32
    HIDDEN_SIZE = 32
    Q_GLIMPSES = 2
    I_GLIMPSES = 2
    n_layers = 1
    DROPOUT_R = 0.1      # identity in eval mode
    HIGH_ORDER = True


C = Cfg()
D_BERT = 32
KO = C.MFB_K * C.MFB_O          # 128
O = C.MFB_O                     # 32
K = C.MFB_K                     # 4
NPROJ = 8                       # 4 folded projections for mfh1 + 4 for mfh2
D_IN = 4 * D_BERT               # 128 : concat([words, text, ents, struct])
WIDE = NPROJ * KO               # 1024
OUT_W = 128                     # lane-dense output width (4 copies of the 32-wide z)

# rows per batch tile; dominant VMEM tenant is the (tb, 1024) f32 post-matmul
# intermediate (8 MiB at tb=2048) -> comfortably inside 32 MiB scoped VMEM.
MAX_TB = 2048

# sum-pool matrix: (KO, O), P[i, j] = 1 if i // K == j  (AvgPool1d(K) * K == group sum)
_POOL = (jnp.arange(KO)[:, None] // K == jnp.arange(O)[None, :]).astype(jnp.float32)


def _round_up(a, b):
    return -(-a // b) * b


# ------------------------- fused MFH-chain kernel -------------------------
def _mfh_chain_kernel(x_ref, w_ref, b_ref, pool_ref, o_ref):
    """Fused Res-E-MFH high-order chain for one batch tile:
    one bf16 MXU pass for all 8 folded projections -> elementwise fusion ->
    merged sum-pool(K) -> signed-sqrt -> L2-normalize -> chain combination."""
    f32 = jnp.float32

    # Single bf16 MXU pass (f32 accumulation) for all eight projections against
    # the block-diagonal packed weight; cols [0,4*KO) -> mfh1, [4*KO,8*KO) -> mfh2.
    h = jnp.dot(x_ref[...], w_ref[...], preferred_element_type=f32) + b_ref[...]
    c = [h[:, j * KO:(j + 1) * KO] for j in range(NPROJ)]   # 128-lane aligned slices
    base1 = c[0] * c[1] * c[2] * c[3]           # mfh1 fusion  (== exp1..exp5)
    base2 = c[4] * c[5] * c[6] * c[7]           # mfh2 fusion term

    # Merged sum-pool for z1 and z6 in one MXU pass against the block-diagonal
    # (2*KO, 2*O) pool matrix.  AvgPool1d(K, stride=K) * K == group sum.
    e12 = jnp.concatenate([base1, base2 * base1], axis=-1)            # (tb, 256)
    s = jnp.dot(e12, pool_ref[...], preferred_element_type=f32)       # (tb, 64)

    # signed sqrt: sign(s) * sqrt(|s|)   (one EUP sqrt instead of two)
    t = jnp.where(s >= 0.0, 1.0, -1.0) * jnp.sqrt(jnp.abs(s))
    t1 = t[:, :O]                               # pooled+sqrt'd mfh1 term
    t6 = t[:, O:]                               # pooled+sqrt'd mfh2 term

    # F.normalize over the flattened (B, S*O); S == 1.  rsqrt -> EUP path.
    n1 = lax.rsqrt(jnp.maximum(jnp.sum(t1 * t1, axis=-1, keepdims=True), 1e-24))
    n6 = lax.rsqrt(jnp.maximum(jnp.sum(t6 * t6, axis=-1, keepdims=True), 1e-24))

    # mean over cat(z1..z6): z1==z2==z4==z5, z3 = 2*z1, z6 = norm6 + 2*z1
    #   -> z = (8*z1 + norm6) / 6
    z = (8.0 * t1 * n1 + t6 * n6) * (1.0 / 6.0)                        # (tb, O)

    # lane-dense 128-wide output block -> unmasked stores; wrapper keeps [:, :O]
    o_ref[...] = jnp.concatenate([z, z, z, z], axis=-1)


# ----------------------- weight packing (once, at init) -----------------------
def pack_chain_params(params):
    """Fold the glimpse duplication into the weights and pack all 8 projections
    into one block-diagonal (D_IN, 8*KO) bf16 matrix + packed bias + merged
    block-diagonal pooling matrix.  Done ONCE -- not in the per-call path."""
    def fold(p):
        # words_att_feat == [words, words], text_att_feat == [text, text]
        # (softmax over the length-1 seq axis is identically 1), so
        # [w, w] @ Wi == w @ (Wi[:D] + Wi[D:]) exactly; likewise for Wq.
        Wi = p["Wi"][:D_BERT] + p["Wi"][D_BERT:]
        Wq = p["Wq"][:D_BERT] + p["Wq"][D_BERT:]
        return [Wi, Wq, p["We"], p["Ws"]], [p["bi"], p["bq"], p["be"], p["bs"]]

    ws1, bs1 = fold(params["mfh1"])
    ws2, bs2 = fold(params["mfh2"])
    cols = []
    for j, w in enumerate(ws1 + ws2):
        seg = j % 4          # input segment of x: words / text / ents / struct
        col = jnp.zeros((D_IN, KO), jnp.float32).at[seg * D_BERT:(seg + 1) * D_BERT].set(w)
        cols.append(col)
    w_big = jnp.concatenate(cols, axis=1)                      # (128, 1024)
    b_big = jnp.concatenate(bs1 + bs2, axis=1)                 # (1, 1024)
    pool_big = jnp.zeros((2 * KO, 2 * O), jnp.float32)
    pool_big = pool_big.at[:KO, :O].set(_POOL).at[KO:, O:].set(_POOL)
    return w_big.astype(jnp.bfloat16), b_big, pool_big


def mfh_chain_call(x, w_big, b_big, pool_big):
    """Run the fused MFH chain over the batch. x: (B, D_IN) bf16 -> (B, O) f32."""
    B = x.shape[0]
    # No wrapper-side padding: Pallas masks the ragged edge block and all math is
    # per-row, so garbage edge rows never reach a valid output row.
    if B <= 8:
        tb = B                                            # block == full array dims
    else:
        # >= 2 grid steps whenever possible so the "parallel" axis feeds both v7x TCs
        tb = min(MAX_TB, _round_up(pl.cdiv(B, 2), 8))
    grid = (pl.cdiv(B, tb),)

    out = pl.pallas_call(
        _mfh_chain_kernel,
        out_shape=jax.ShapeDtypeStruct((B, OUT_W), jnp.float32),
        grid_spec=pltpu.PrefetchScalarGridSpec(
            num_scalar_prefetch=0,
            grid=grid,
            in_specs=[
                pl.BlockSpec((tb, D_IN), lambda i: (i, 0)),        # activations (bf16), batch-tiled
                pl.BlockSpec((D_IN, WIDE), lambda i: (0, 0)),      # packed weights (bf16), resident
                pl.BlockSpec((1, WIDE), lambda i: (0, 0)),         # packed biases (f32), resident
                pl.BlockSpec((2 * KO, 2 * O), lambda i: (0, 0)),   # merged pool matrix, resident
            ],
            out_specs=pl.BlockSpec((tb, OUT_W), lambda i: (i, 0)),
        ),
        compiler_params=pltpu.CompilerParams(
            dimension_semantics=("parallel",),        # shard batch tiles across TCs (v7x)
            vmem_limit_bytes=32 * 1024 * 1024,
        ),
    )(x, w_big, b_big, pool_big)
    return out[:, :O]


# ------------------------------ optimized forward ------------------------------
def res_emfh_apply(packed, words_feat, text_feat, ents_feat, struct_feat):
    """packed = pack_chain_params(params) computed once at init (hoisted)."""
    w_big, b_big, pool_big = packed
    # bf16 MXU operands; accumulation and all post-matmul math stay f32 in-kernel.
    x = jnp.concatenate([words_feat, text_feat, ents_feat, struct_feat],
                        axis=-1).astype(jnp.bfloat16)              # (B, 128)
    return mfh_chain_call(x, w_big, b_big, pool_big)               # (B, O) f32


# ------------------- faithful pure-JAX reference (for checking) -------------------
def _mlp_ref(p, x):
    h = jax.nn.relu(x @ p["W1"] + p["b1"])     # FC(in, mid, relu); dropout = id (eval)
    return h @ p["W2"] + p["b2"]


def _lstm_ref(p, x, hidden):
    # single-layer batch_first LSTM, h0 = c0 = 0, PyTorch gate order (i, f, g, o)
    Bsz, T, _ = x.shape
    h = jnp.zeros((Bsz, hidden), jnp.float32)
    c = jnp.zeros((Bsz, hidden), jnp.float32)
    outs = []
    for t in range(T):
        gates = x[:, t] @ p["Wih"].T + p["bih"] + h @ p["Whh"].T + p["bhh"]
        i, f, g, o = jnp.split(gates, 4, axis=-1)
        i = jax.nn.sigmoid(i); f = jax.nn.sigmoid(f)
        g = jnp.tanh(g); o = jax.nn.sigmoid(o)
        c = f * c + i * g
        h = o * jnp.tanh(c)
        outs.append(h)
    return jnp.stack(outs, axis=1)


def _mfb_ref(p, xw, xt, xe, xs, exp_in, is_first):
    # xw/xt/xe/xs: (B, 1, d*); returns (z (B, 1, O), exp_out (B, 1, KO))
    wp = xw @ p["Wi"] + p["bi"]
    tp = xt @ p["Wq"] + p["bq"]
    ep = xe @ p["We"] + p["be"]
    sp = xs @ p["Ws"] + p["bs"]
    exp_out = wp * tp * ep * sp
    if not is_first:
        exp_out = exp_out * exp_in               # dropout = identity (eval)
    B = xw.shape[0]
    z = exp_out.reshape(B, 1, O, K).mean(-1) * K           # AvgPool1d(K) * K
    z = jnp.sqrt(jnp.maximum(z, 0.0)) - jnp.sqrt(jnp.maximum(-z, 0.0))
    zf = z.reshape(B, -1)
    zf = zf / jnp.maximum(jnp.sqrt(jnp.sum(zf * zf, axis=-1, keepdims=True)), 1e-12)
    return zf.reshape(B, 1, O), exp_out


def _text_att_ref(p, text3):
    att = _mlp_ref(p["mlp"], text3)
    att = _lstm_ref(p["lstm"], att, C.Q_GLIMPSES)
    att = jax.nn.relu(att)
    att = jax.nn.softmax(att, axis=1)
    feats = [jnp.sum(att[:, :, i:i + 1] * text3, axis=1) for i in range(C.Q_GLIMPSES)]
    return jnp.concatenate(feats, axis=1)


def _words_att_ref(p, words3, text_att_feat, ents3, struct3):
    text3 = text_att_feat[:, None, :]
    z, _ = _mfb_ref(p["mfb"], words3, text3, ents3, struct3, None, True)
    att = _mlp_ref(p["mlp"], z)
    att = _lstm_ref(p["lstm"], att, C.I_GLIMPSES)
    att = jax.nn.relu(att)
    att = jax.nn.softmax(att, axis=1)
    feats = [jnp.sum(att[:, :, i:i + 1] * words3, axis=1) for i in range(C.I_GLIMPSES)]
    return jnp.concatenate(feats, axis=1)


def res_emfh_reference(params, words_feat, text_feat, ents_feat, struct_feat):
    w3, t3, en3, st3 = (a[:, None, :] for a in (words_feat, text_feat, ents_feat, struct_feat))
    text_att_feat = _text_att_ref(params["text_att"], t3)
    words_att_feat = _words_att_ref(params["words_att"], w3, text_att_feat, en3, st3)
    m1, m2 = params["mfh1"], params["mfh2"]
    wa3, ta3 = words_att_feat[:, None, :], text_att_feat[:, None, :]
    z1, e1 = _mfb_ref(m1, wa3, ta3, en3, st3, None, True)
    residual = z1
    z2, e2 = _mfb_ref(m1, wa3, ta3, en3, st3, e1, True)
    z3, e3x = _mfb_ref(m1, wa3, ta3, en3, st3, e2, True)
    z3 = z3 + residual
    residual = z3
    z4, e4 = _mfb_ref(m1, wa3, ta3, en3, st3, e3x, True)
    z5, e5 = _mfb_ref(m1, wa3, ta3, en3, st3, e4, True)
    z6, _ = _mfb_ref(m2, wa3, ta3, en3, st3, e5, False)
    z6 = z6 + residual
    z = jnp.mean(jnp.concatenate([z1, z2, z3, z4, z5, z6], axis=1), axis=1)
    return z


# ---------------------------- parameter setup -----------------------------
def _linear(key, d_in, d_out):
    k1, k2 = jax.random.split(key)
    bound = 1.0 / jnp.sqrt(d_in)
    W = jax.random.uniform(k1, (d_in, d_out), jnp.float32, -bound, bound)
    b = jax.random.uniform(k2, (1, d_out), jnp.float32, -bound, bound)
    return W, b


def _mfb_params(key, d_words, d_text, d_bert):
    ks = jax.random.split(key, 4)
    Wi, bi = _linear(ks[0], d_words, KO)
    Wq, bq = _linear(ks[1], d_text, KO)
    We, be = _linear(ks[2], d_bert, KO)
    Ws, bs = _linear(ks[3], d_bert, KO)
    return dict(Wi=Wi, bi=bi, Wq=Wq, bq=bq, We=We, be=be, Ws=Ws, bs=bs)


def _mlp_params(key, d_in, d_mid, d_out):
    k1, k2 = jax.random.split(key)
    W1, b1 = _linear(k1, d_in, d_mid)
    W2, b2 = _linear(k2, d_mid, d_out)
    return dict(W1=W1, b1=b1, W2=W2, b2=b2)


def _lstm_params(key, hidden):
    ks = jax.random.split(key, 4)
    bound = 1.0 / jnp.sqrt(hidden)
    return dict(
        Wih=jax.random.uniform(ks[0], (4 * hidden, hidden), jnp.float32, -bound, bound),
        Whh=jax.random.uniform(ks[1], (4 * hidden, hidden), jnp.float32, -bound, bound),
        bih=jax.random.uniform(ks[2], (4 * hidden,), jnp.float32, -bound, bound),
        bhh=jax.random.uniform(ks[3], (4 * hidden,), jnp.float32, -bound, bound),
    )


def init_params(key, d_bert):
    d_words = d_text = d_bert
    d_words_att = d_words * C.I_GLIMPSES
    d_text_att = d_words * C.Q_GLIMPSES
    ks = jax.random.split(key, 8)
    return {
        # text_att / words_att heads are mathematically dead for S=1 (softmax of a
        # length-1 axis == 1); kept only for the faithful reference check.
        "text_att": {
            "mlp": _mlp_params(ks[0], d_text, C.HIDDEN_SIZE, C.Q_GLIMPSES),
            "lstm": _lstm_params(ks[1], C.Q_GLIMPSES),
        },
        "words_att": {
            "mfb": _mfb_params(ks[2], d_words, d_text_att, d_bert),
            "mlp": _mlp_params(ks[3], C.MFB_O, C.HIDDEN_SIZE, C.I_GLIMPSES),
            "lstm": _lstm_params(ks[4], C.I_GLIMPSES),
        },
        # mfh3..mfh6 are constructed in __init__ but never used in forward -> omitted
        "mfh1": _mfb_params(ks[5], d_words_att, d_text_att, d_bert),
        "mfh2": _mfb_params(ks[6], d_words_att, d_text_att, d_bert),
    }


# --------------------------------- main -----------------------------------
if __name__ == "__main__":
    key = jax.random.PRNGKey(0)
    kp, kw, kt, ke, ks = jax.random.split(key, 5)

    B = 2
    params = init_params(kp, D_BERT)

    words_feat = jax.random.normal(kw, (B, D_BERT), jnp.float32)
    text_feat = jax.random.normal(kt, (B, D_BERT), jnp.float32)
    ents_feat = jax.random.normal(ke, (B, D_BERT), jnp.float32)
    struct_feat = jax.random.normal(ks, (B, D_BERT), jnp.float32)

    # Pack the chain weights ONCE (hoisted out of the per-call path).
    packed = pack_chain_params(params)
    packed = jax.tree_util.tree_map(jax.block_until_ready, packed)

    fwd = jax.jit(res_emfh_apply)
    z = fwd(packed, words_feat, text_feat, ents_feat, struct_feat)
    jax.block_until_ready(z)

    assert z.shape == (B, C.MFB_O), z.shape
    assert bool(jnp.all(jnp.isfinite(z)))

    # sanity check against the faithful (attention heads included, f32) pure-JAX
    # reference; tolerance loosened to accommodate the bf16 MXU operands.
    z_ref = jax.jit(res_emfh_reference)(params, words_feat, text_feat, ents_feat, struct_feat)
    jax.block_until_ready(z_ref)
    max_err = float(jnp.max(jnp.abs(z - z_ref)))
    assert max_err < 2e-2, max_err

    print("KERNEL_OK")
</pallas_src>

<mosaic_0001>
module attributes {stable_mosaic.version = 11 : i64} {
  func.func @_mfh_chain_kernel(%arg0: i32, %arg1: memref<2x128xbf16, #tpu.memory_space<vmem>>, %arg2: memref<128x1024xbf16, #tpu.memory_space<vmem>>, %arg3: memref<1x1024xf32, #tpu.memory_space<vmem>>, %arg4: memref<256x64xf32, #tpu.memory_space<vmem>>, %arg5: memref<2x128xf32, #tpu.memory_space<vmem>>) attributes {dimension_semantics = [#tpu.dimension_semantics<parallel>], iteration_bounds = array<i64: 1>, scalar_prefetch = 0 : i64, scratch_operands = 0 : i64, tpu.core_type = #tpu.core_type<tc>, window_params = [{transform_indices = @transform_0, window_bounds = array<i64: 2, 128>}, {pipeline_mode = #tpu.pipeline_mode<synchronous>, transform_indices = @transform_1, window_bounds = array<i64: 128, 1024>}, {pipeline_mode = #tpu.pipeline_mode<synchronous>, transform_indices = @transform_2, window_bounds = array<i64: 1, 1024>}, {pipeline_mode = #tpu.pipeline_mode<synchronous>, transform_indices = @transform_3, window_bounds = array<i64: 256, 64>}, {transform_indices = @transform_4, window_bounds = array<i64: 2, 128>}]} {
    %c0 = arith.constant 0 : index
    %c0_0 = arith.constant 0 : index
    %0 = vector.load %arg1[%c0, %c0_0] : memref<2x128xbf16, #tpu.memory_space<vmem>>, vector<2x128xbf16>
    %c0_1 = arith.constant 0 : index
    %c0_2 = arith.constant 0 : index
    %1 = vector.load %arg2[%c0_1, %c0_2] : memref<128x1024xbf16, #tpu.memory_space<vmem>>, vector<128x1024xbf16>
    %cst = arith.constant dense<0.000000e+00> : vector<2x1024xf32>
    %2 = tpu.matmul %0, %1, %cst {dimension_numbers = #tpu.dot_dimension_numbers<[1], [0], [0], [1], [0, 0, 1, 1], [], []>} : vector<2x128xbf16>, vector<128x1024xbf16>, vector<2x1024xf32> -> vector<2x1024xf32>
    %c0_3 = arith.constant 0 : index
    %c0_4 = arith.constant 0 : index
    %3 = vector.load %arg3[%c0_3, %c0_4] : memref<1x1024xf32, #tpu.memory_space<vmem>>, vector<1x1024xf32>
    %4 = vector.broadcast %3 : vector<1x1024xf32> to vector<2x1024xf32>
    %5 = arith.addf %2, %4 : vector<2x1024xf32>
    %6 = vector.extract_strided_slice %5 {offsets = [0, 0], sizes = [2, 128], strides = [1, 1]} : vector<2x1024xf32> to vector<2x128xf32>
    %7 = vector.extract_strided_slice %5 {offsets = [0, 128], sizes = [2, 128], strides = [1, 1]} : vector<2x1024xf32> to vector<2x128xf32>
    %8 = vector.extract_strided_slice %5 {offsets = [0, 256], sizes = [2, 128], strides = [1, 1]} : vector<2x1024xf32> to vector<2x128xf32>
    %9 = vector.extract_strided_slice %5 {offsets = [0, 384], sizes = [2, 128], strides = [1, 1]} : vector<2x1024xf32> to vector<2x128xf32>
    %10 = vector.extract_strided_slice %5 {offsets = [0, 512], sizes = [2, 128], strides = [1, 1]} : vector<2x1024xf32> to vector<2x128xf32>
    %11 = vector.extract_strided_slice %5 {offsets = [0, 640], sizes = [2, 128], strides = [1, 1]} : vector<2x1024xf32> to vector<2x128xf32>
    %12 = vector.extract_strided_slice %5 {offsets = [0, 768], sizes = [2, 128], strides = [1, 1]} : vector<2x1024xf32> to vector<2x128xf32>
    %13 = vector.extract_strided_slice %5 {offsets = [0, 896], sizes = [2, 128], strides = [1, 1]} : vector<2x1024xf32> to vector<2x128xf32>
    %14 = arith.mulf %6, %7 : vector<2x128xf32>
    %15 = arith.mulf %14, %8 : vector<2x128xf32>
    %16 = arith.mulf %15, %9 : vector<2x128xf32>
    %17 = arith.mulf %10, %11 : vector<2x128xf32>
    %18 = arith.mulf %17, %12 : vector<2x128xf32>
    %19 = arith.mulf %18, %13 : vector<2x128xf32>
    %20 = arith.mulf %19, %16 : vector<2x128xf32>
    %21 = tpu.concatenate %16, %20 in 1 : vector<2x128xf32>, vector<2x128xf32> -> vector<2x256xf32>
    %c0_5 = arith.constant 0 : index
    %c0_6 = arith.constant 0 : index
    %22 = vector.load %arg4[%c0_5, %c0_6] : memref<256x64xf32, #tpu.memory_space<vmem>>, vector<256x64xf32>
    %cst_7 = arith.constant dense<0.000000e+00> : vector<2x64xf32>
    %23 = tpu.matmul %21, %22, %cst_7 {dimension_numbers = #tpu.dot_dimension_numbers<[1], [0], [0], [1], [0, 0, 1, 1], [], []>} : vector<2x256xf32>, vector<256x64xf32>, vector<2x64xf32> -> vector<2x64xf32>
    %cst_8 = arith.constant 0.000000e+00 : f32
    %24 = vector.broadcast %cst_8 : f32 to vector<2x64xf32>
    %25 = arith.cmpf oge, %23, %24 : vector<2x64xf32>
    %cst_9 = arith.constant 1.000000e+00 : f32
    %cst_10 = arith.constant -1.000000e+00 : f32
    %26 = vector.broadcast %cst_9 : f32 to vector<2x64xf32>
    %27 = vector.broadcast %cst_10 : f32 to vector<2x64xf32>
    %28 = arith.select %25, %26, %27 : vector<2x64xi1>, vector<2x64xf32>
    %29 = math.absf %23 : vector<2x64xf32>
    %30 = math.sqrt %29 : vector<2x64xf32>
    %31 = arith.mulf %28, %30 : vector<2x64xf32>
    %32 = vector.extract_strided_slice %31 {offsets = [0, 0], sizes = [2, 32], strides = [1, 1]} : vector<2x64xf32> to vector<2x32xf32>
    %33 = vector.extract_strided_slice %31 {offsets = [0, 32], sizes = [2, 32], strides = [1, 1]} : vector<2x64xf32> to vector<2x32xf32>
    %34 = arith.mulf %32, %32 : vector<2x32xf32>
    %cst_11 = arith.constant dense<0.000000e+00> : vector<2xf32>
    %35 = vector.multi_reduction <add>, %34, %cst_11 [1] : vector<2x32xf32> to vector<2xf32>
    %36 = vector.shape_cast %35 : vector<2xf32> to vector<2x1xf32>
    %cst_12 = arith.constant 1.000000e-24 : f32
    %37 = vector.broadcast %cst_12 : f32 to vector<2x1xf32>
    %38 = arith.maximumf %36, %37 : vector<2x1xf32>
    %39 = math.rsqrt %38 : vector<2x1xf32>
    %40 = arith.mulf %33, %33 : vector<2x32xf32>
    %cst_13 = arith.constant dense<0.000000e+00> : vector<2xf32>
    %41 = vector.multi_reduction <add>, %40, %cst_13 [1] : vector<2x32xf32> to vector<2xf32>
    %42 = vector.shape_cast %41 : vector<2xf32> to vector<2x1xf32>
    %cst_14 = arith.constant 1.000000e-24 : f32
    %43 = vector.broadcast %cst_14 : f32 to vector<2x1xf32>
    %44 = arith.maximumf %42, %43 : vector<2x1xf32>
    %45 = math.rsqrt %44 : vector<2x1xf32>
    %cst_15 = arith.constant 8.000000e+00 : f32
    %46 = vector.broadcast %cst_15 : f32 to vector<2x32xf32>
    %47 = arith.mulf %46, %32 : vector<2x32xf32>
    %48 = vector.broadcast %39 : vector<2x1xf32> to vector<2x32xf32>
    %49 = arith.mulf %47, %48 : vector<2x32xf32>
    %50 = vector.broadcast %45 : vector<2x1xf32> to vector<2x32xf32>
    %51 = arith.mulf %33, %50 : vector<2x32xf32>
    %52 = arith.addf %49, %51 : vector<2x32xf32>
    %cst_16 = arith.constant 0.166666672 : f32
    %53 = vector.broadcast %cst_16 : f32 to vector<2x32xf32>
    %54 = arith.mulf %52, %53 : vector<2x32xf32>
    %55 = tpu.concatenate %54, %54, %54, %54 in 1 : vector<2x32xf32>, vector<2x32xf32>, vector<2x32xf32>, vector<2x32xf32> -> vector<2x128xf32>
    %c0_17 = arith.constant 0 : index
    %c0_18 = arith.constant 0 : index
    %56 = vector.load %arg5[%c0_17, %c0_18] : memref<2x128xf32, #tpu.memory_space<vmem>>, vector<2x128xf32>
    tpu.vector_store %arg5[%c0_17, %c0_18], %55 {strides = array<i32>} : memref<2x128xf32, #tpu.memory_space<vmem>>, vector<2x128xf32>,
    return
  }
  func.func @transform_0(%arg0: i32) -> (i32, i32) {
    %c0_i32 = arith.constant 0 : i32
    %c0_i32_0 = arith.constant 0 : i32
    return %arg0, %c0_i32 : i32, i32
  }
  func.func @transform_1(%arg0: i32) -> (i32, i32) {
    %c0_i32 = arith.constant 0 : i32
    %c0_i32_0 = arith.constant 0 : i32
    %c0_i32_1 = arith.constant 0 : i32
    return %c0_i32, %c0_i32_0 : i32, i32
  }
  func.func @transform_2(%arg0: i32) -> (i32, i32) {
    %c0_i32 = arith.constant 0 : i32
    %c0_i32_0 = arith.constant 0 : i32
    %c0_i32_1 = arith.constant 0 : i32
    return %c0_i32, %c0_i32_0 : i32, i32
  }
  func.func @transform_3(%arg0: i32) -> (i32, i32) {
    %c0_i32 = arith.constant 0 : i32
    %c0_i32_0 = arith.constant 0 : i32
    %c0_i32_1 = arith.constant 0 : i32
    return %c0_i32, %c0_i32_0 : i32, i32
  }
  func.func @transform_4(%arg0: i32) -> (i32, i32) {
    %c0_i32 = arith.constant 0 : i32
    %c0_i32_0 = arith.constant 0 : i32
    return %arg0, %c0_i32 : i32, i32
  }
}

</mosaic_0001>

<llo_original>
// kernel: res_emfh_apply.1
$region0: #{res_emfh_apply.1}
  #allocation0 [shape = 'u32[]', space=smem, size = 0x4, offset = 0x4, fixed_abs, tag = 'smem constant byte address 0x4 - core index']
  #allocation1 [shape = 'u32[72,128]{1,0:T(1,128)}', space=vmem, size = 0x9000, scoped, tag = 'internal scratch']
  %s0 = inlined_call_operand.vmem [shape: bf16[2,128], index: 0, kind: input, shape index: {}]
  %s1 = inlined_call_operand.hbm [shape: bf16[128,1024], index: 1, kind: input, shape index: {}]
  %s2 = inlined_call_operand.vmem [shape: f32[1,1024], index: 2, kind: input, shape index: {}]
  %s3 = inlined_call_operand.vmem [shape: f32[256,64], index: 3, kind: input, shape index: {}]
  %s4 = inlined_call_operand.hbm [shape: f32[2,128], index: 4, kind: output, shape index: {}]
  %s5 = sld [smem:[#allocation0]]
  $region30: #{res_emfh_apply.1} parent=0
    _
  %s7 = ssub.s32 1, %s5
  %s8 = scalar_select 0, %s7, %s5
  $region1: #{res_emfh_apply.1} parent=0
    #allocation2 [shape = 'u8[262144]{0}', space=vmem, size = 0x40000, scoped, tag = 'input window, operand 1, single buffered']
    #allocation3 [shape = 's32[1]{0}', space=sflag, size = 0x4, scoped, tag = 'scoped memory for res_emfh_apply.1']
    #allocation4 [shape = 's32[1]{0}', space=sflag, size = 0x4, scoped, tag = 'scoped memory for res_emfh_apply.1']
    #allocation5 [shape = 'u8[1024]{0}', space=vmem, size = 0x400, scoped, tag = 'output window, operand 0, single buffered']
    %9 = vsyncpa [#allocation3], 0
    %10 = vsyncpa [#allocation4], 0
    // Predicated region
    $region2: #{res_emfh_apply.1} parent=1 // pred_check
      _
    $region3: #{res_emfh_apply.1} parent=1 // pred_check_branch
      %12 = sbr.rel (0) target = $region5
    $region4: #{res_emfh_apply.1} parent=1 // pred_region
      _
    $region5: #{res_emfh_apply.1} parent=1 // pred_fallthru
      _
    // Predicated region
    $region6: #{res_emfh_apply.1} parent=1 // pred_check
      _
    $region7: #{res_emfh_apply.1} parent=1 // pred_check_branch
      %14 = sbr.rel (0) target = $region9
    $region8: #{res_emfh_apply.1} parent=1 // pred_region
      %16 = vsyncadd [#allocation3], 0
      %s17 = sshll.u32 %s1, 4
      %s18 = int_to_ptr.hbm [resolvable:$true] %s17
      %s19 = sshll.u32 [#allocation2], 4
      %s20 = int_to_ptr.vmem [resolvable:$true] %s19
      %25 = dma.hbm_to_vmem [thread:$0]  %s18, 8192, %s20, [#allocation3], 512, 512, 32
    $region9: #{res_emfh_apply.1} parent=1 // pred_fallthru
      _
    // Predicated region
    $region10: #{res_emfh_apply.1} parent=1 // pred_check
      _
    $region11: #{res_emfh_apply.1} parent=1 // pred_check_branch
      %27 = sbr.rel (0) target = $region13
    $region12: #{res_emfh_apply.1} parent=1 // pred_region
      _
    $region13: #{res_emfh_apply.1} parent=1 // pred_fallthru
      _
    // Predicated region
    $region14: #{res_emfh_apply.1} parent=1 // pred_check
      _
    $region15: #{res_emfh_apply.1} parent=1 // pred_check_branch
      %29 = sbr.rel (0) target = $region17
    $region16: #{res_emfh_apply.1} parent=1 // pred_region
      _
    $region17: #{res_emfh_apply.1} parent=1 // pred_fallthru
      _
    // Predicated region
    $region18: #{res_emfh_apply.1} parent=1 // pred_check
      _
    $region19: #{res_emfh_apply.1} parent=1 // pred_check_branch
      %31 = sbr.rel (0) target = $region21
    $region20: #{res_emfh_apply.1} parent=1 // pred_region
      %33 = dma.done [#allocation3], 8192
    $region21: #{res_emfh_apply.1} parent=1 // pred_fallthru
      _
    %v34 = vld [vmem:[%s0] sm:$0x1]
    %v35 = vld [vmem:[#allocation2] sm:$0xff]
    %v36 = vld [vmem:[#allocation2 + $0x8] sm:$0xff]
    %v37 = vld [vmem:[#allocation2 + $0x10] sm:$0xff]
    %v38 = vld [vmem:[#allocation2 + $0x18] sm:$0xff]
    %v39 = vld [vmem:[#allocation2 + $0x20] sm:$0xff]
    %v40 = vld [vmem:[#allocation2 + $0x28] sm:$0xff]
    %v41 = vld [vmem:[#allocation2 + $0x30] sm:$0xff]
    %v42 = vld [vmem:[#allocation2 + $0x38] sm:$0xff]
    %v43 = vld [vmem:[#allocation2 + $0x40] sm:$0xff]
    %v44 = vld [vmem:[#allocation2 + $0x48] sm:$0xff]
    %v45 = vld [vmem:[#allocation2 + $0x50] sm:$0xff]
    %v46 = vld [vmem:[#allocation2 + $0x58] sm:$0xff]
    %v47 = vld [vmem:[#allocation2 + $0x60] sm:$0xff]
    %v48 = vld [vmem:[#allocation2 + $0x68] sm:$0xff]
    %v49 = vld [vmem:[#allocation2 + $0x70] sm:$0xff]
    %v50 = vld [vmem:[#allocation2 + $0x78] sm:$0xff]
    %v51 = vld [vmem:[#allocation2 + $0x80] sm:$0xff]
    %v52 = vld [vmem:[#allocation2 + $0x88] sm:$0xff]
    %v53 = vld [vmem:[#allocation2 + $0x90] sm:$0xff]
    %v54 = vld [vmem:[#allocation2 + $0x98] sm:$0xff]
    %v55 = vld [vmem:[#allocation2 + $0xa0] sm:$0xff]
    %v56 = vld [vmem:[#allocation2 + $0xa8] sm:$0xff]
    %v57 = vld [vmem:[#allocation2 + $0xb0] sm:$0xff]
    %v58 = vld [vmem:[#allocation2 + $0xb8] sm:$0xff]
    %v59 = vld [vmem:[#allocation2 + $0xc0] sm:$0xff]
    %v60 = vld [vmem:[#allocation2 + $0xc8] sm:$0xff]
    %v61 = vld [vmem:[#allocation2 + $0xd0] sm:$0xff]
    %v62 = vld [vmem:[#allocation2 + $0xd8] sm:$0xff]
    %v63 = vld [vmem:[#allocation2 + $0xe0] sm:$0xff]
    %v64 = vld [vmem:[#allocation2 + $0xe8] sm:$0xff]
    %v65 = vld [vmem:[#allocation2 + $0xf0] sm:$0xff]
    %v66 = vld [vmem:[#allocation2 + $0xf8] sm:$0xff]
    %v67 = vld [vmem:[#allocation2 + $0x100] sm:$0xff]
    %v68 = vld [vmem:[#allocation2 + $0x108] sm:$0xff]
    %v69 = vld [vmem:[#allocation2 + $0x110] sm:$0xff]
    %v70 = vld [vmem:[#allocation2 + $0x118] sm:$0xff]
    %v71 = vld [vmem:[#allocation2 + $0x120] sm:$0xff]
    %v72 = vld [vmem:[#allocation2 + $0x128] sm:$0xff]
    %v73 = vld [vmem:[#allocation2 + $0x130] sm:$0xff]
    %v74 = vld [vmem:[#allocation2 + $0x138] sm:$0xff]
    %v75 = vld [vmem:[#allocation2 + $0x140] sm:$0xff]
    %v76 = vld [vmem:[#allocation2 + $0x148] sm:$0xff]
    %v77 = vld [vmem:[#allocation2 + $0x150] sm:$0xff]
    %v78 = vld [vmem:[#allocation2 + $0x158] sm:$0xff]
    %v79 = vld [vmem:[#allocation2 + $0x160] sm:$0xff]
    %v80 = vld [vmem:[#allocation2 + $0x168] sm:$0xff]
    %v81 = vld [vmem:[#allocation2 + $0x170] sm:$0xff]
    %v82 = vld [vmem:[#allocation2 + $0x178] sm:$0xff]
    %v83 = vld [vmem:[#allocation2 + $0x180] sm:$0xff]
    %v84 = vld [vmem:[#allocation2 + $0x188] sm:$0xff]
    %v85 = vld [vmem:[#allocation2 + $0x190] sm:$0xff]
    %v86 = vld [vmem:[#allocation2 + $0x198] sm:$0xff]
    %v87 = vld [vmem:[#allocation2 + $0x1a0] sm:$0xff]
    %v88 = vld [vmem:[#allocation2 + $0x1a8] sm:$0xff]
    %v89 = vld [vmem:[#allocation2 + $0x1b0] sm:$0xff]
    %v90 = vld [vmem:[#allocation2 + $0x1b8] sm:$0xff]
    %v91 = vld [vmem:[#allocation2 + $0x1c0] sm:$0xff]
    %v92 = vld [vmem:[#allocation2 + $0x1c8] sm:$0xff]
    %v93 = vld [vmem:[#allocation2 + $0x1d0] sm:$0xff]
    %v94 = vld [vmem:[#allocation2 + $0x1d8] sm:$0xff]
    %v95 = vld [vmem:[#allocation2 + $0x1e0] sm:$0xff]
    %v96 = vld [vmem:[#allocation2 + $0x1e8] sm:$0xff]
    %v97 = vld [vmem:[#allocation2 + $0x1f0] sm:$0xff]
    %v98 = vld [vmem:[#allocation2 + $0x1f8] sm:$0xff]
    %v99 = vld [vmem:[%s2] sm:$0xff]
    %v101 = vperm.slane %v99, 0
    %v102 = vperm.slane %v99, 1
    %v103 = vperm.slane %v99, 2
    %v104 = vperm.slane %v99, 3
    %v105 = vperm.slane %v99, 4
    %v106 = vperm.slane %v99, 5
    %v107 = vperm.slane %v99, 6
    %v108 = vperm.slane %v99, 7
    %v181 = vunpack.c.l.b16 %v35
    %v182 = vunpack.c.h.b16 %v35
    %v183 = vunpack.c.l.b16 %v36
    %v184 = vunpack.c.h.b16 %v36
    %v185 = vunpack.c.l.b16 %v37
    %v186 = vunpack.c.h.b16 %v37
    %v187 = vunpack.c.l.b16 %v38
    %v188 = vunpack.c.h.b16 %v38
    %v189 = vunpack.c.l.b16 %v39
    %v190 = vunpack.c.h.b16 %v39
    %v191 = vunpack.c.l.b16 %v40
    %v192 = vunpack.c.h.b16 %v40
    %v193 = vunpack.c.l.b16 %v41
    %v194 = vunpack.c.h.b16 %v41
    %v195 = vunpack.c.l.b16 %v42
    %v196 = vunpack.c.h.b16 %v42
    %v197 = vunpack.c.l.b16 %v43
    %v198 = vunpack.c.h.b16 %v43
    %v199 = vunpack.c.l.b16 %v44
    %v200 = vunpack.c.h.b16 %v44
    %v201 = vunpack.c.l.b16 %v45
    %v202 = vunpack.c.h.b16 %v45
    %v203 = vunpack.c.l.b16 %v46
    %v204 = vunpack.c.h.b16 %v46
    %v205 = vunpack.c.l.b16 %v47
    %v206 = vunpack.c.h.b16 %v47
    %v207 = vunpack.c.l.b16 %v48
    %v208 = vunpack.c.h.b16 %v48
    %v209 = vunpack.c.l.b16 %v49
    %v210 = vunpack.c.h.b16 %v49
    %v211 = vunpack.c.l.b16 %v50
    %v212 = vunpack.c.h.b16 %v50
    %v213 = vunpack.c.l.b16 %v51
    %v214 = vunpack.c.h.b16 %v51
    %v215 = vunpack.c.l.b16 %v52
    %v216 = vunpack.c.h.b16 %v52
    %v217 = vunpack.c.l.b16 %v53
    %v218 = vunpack.c.h.b16 %v53
    %v219 = vunpack.c.l.b16 %v54
    %v220 = vunpack.c.h.b16 %v54
    %v221 = vunpack.c.l.b16 %v55
    %v222 = vunpack.c.h.b16 %v55
    %v223 = vunpack.c.l.b16 %v56
    %v224 = vunpack.c.h.b16 %v56
    %v225 = vunpack.c.l.b16 %v57
    %v226 = vunpack.c.h.b16 %v57
    %v227 = vunpack.c.l.b16 %v58
    %v228 = vunpack.c.h.b16 %v58
    %v229 = vunpack.c.l.b16 %v59
    %v230 = vunpack.c.h.b16 %v59
    %v231 = vunpack.c.l.b16 %v60
    %v232 = vunpack.c.h.b16 %v60
    %v233 = vunpack.c.l.b16 %v61
    %v234 = vunpack.c.h.b16 %v61
    %v235 = vunpack.c.l.b16 %v62
    %v236 = vunpack.c.h.b16 %v62
    %v237 = vunpack.c.l.b16 %v63
    %v238 = vunpack.c.h.b16 %v63
    %v239 = vunpack.c.l.b16 %v64
    %v240 = vunpack.c.h.b16 %v64
    %v241 = vunpack.c.l.b16 %v65
    %v242 = vunpack.c.h.b16 %v65
    %v243 = vunpack.c.l.b16 %v66
    %v244 = vunpack.c.h.b16 %v66
    %v245 = vunpack.c.l.b16 %v67
    %v246 = vunpack.c.h.b16 %v67
    %v247 = vunpack.c.l.b16 %v68
    %v248 = vunpack.c.h.b16 %v68
    %v249 = vunpack.c.l.b16 %v69
    %v250 = vunpack.c.h.b16 %v69
    %v251 = vunpack.c.l.b16 %v70
    %v252 = vunpack.c.h.b16 %v70
    %v253 = vunpack.c.l.b16 %v71
    %v254 = vunpack.c.h.b16 %v71
    %v255 = vunpack.c.l.b16 %v72
    %v256 = vunpack.c.h.b16 %v72
    %v257 = vunpack.c.l.b16 %v73
    %v258 = vunpack.c.h.b16 %v73
    %v259 = vunpack.c.l.b16 %v74
    %v260 = vunpack.c.h.b16 %v74
    %v261 = vunpack.c.l.b16 %v75
    %v262 = vunpack.c.h.b16 %v75
    %v263 = vunpack.c.l.b16 %v76
    %v264 = vunpack.c.h.b16 %v76
    %v265 = vunpack.c.l.b16 %v77
    %v266 = vunpack.c.h.b16 %v77
    %v267 = vunpack.c.l.b16 %v78
    %v268 = vunpack.c.h.b16 %v78
    %v269 = vunpack.c.l.b16 %v79
    %v270 = vunpack.c.h.b16 %v79
    %v271 = vunpack.c.l.b16 %v80
    %v272 = vunpack.c.h.b16 %v80
    %v273 = vunpack.c.l.b16 %v81
    %v274 = vunpack.c.h.b16 %v81
    %v275 = vunpack.c.l.b16 %v82
    %v276 = vunpack.c.h.b16 %v82
    %v277 = vunpack.c.l.b16 %v83
    %v278 = vunpack.c.h.b16 %v83
    %v279 = vunpack.c.l.b16 %v84
    %v280 = vunpack.c.h.b16 %v84
    %v281 = vunpack.c.l.b16 %v85
    %v282 = vunpack.c.h.b16 %v85
    %v283 = vunpack.c.l.b16 %v86
    %v284 = vunpack.c.h.b16 %v86
    %v285 = vunpack.c.l.b16 %v87
    %v286 = vunpack.c.h.b16 %v87
    %v287 = vunpack.c.l.b16 %v88
    %v288 = vunpack.c.h.b16 %v88
    %v289 = vunpack.c.l.b16 %v89
    %v290 = vunpack.c.h.b16 %v89
    %v291 = vunpack.c.l.b16 %v90
    %v292 = vunpack.c.h.b16 %v90
    %v293 = vunpack.c.l.b16 %v91
    %v294 = vunpack.c.h.b16 %v91
    %v295 = vunpack.c.l.b16 %v92
    %v296 = vunpack.c.h.b16 %v92
    %v297 = vunpack.c.l.b16 %v93
    %v298 = vunpack.c.h.b16 %v93
    %v299 = vunpack.c.l.b16 %v94
    %v300 = vunpack.c.h.b16 %v94
    %v301 = vunpack.c.l.b16 %v95
    %v302 = vunpack.c.h.b16 %v95
    %v303 = vunpack.c.l.b16 %v96
    %v304 = vunpack.c.h.b16 %v96
    %v305 = vunpack.c.l.b16 %v97
    %v306 = vunpack.c.h.b16 %v97
    %v307 = vunpack.c.l.b16 %v98
    %v308 = vunpack.c.h.b16 %v98
    %v309 = vpack.c.b16 %v189, %v181
    %v310 = vpack.c.b16 %v190, %v182
    %v311 = vpack.c.b16 %v191, %v183
    %v312 = vpack.c.b16 %v192, %v184
    %v313 = vpack.c.b16 %v193, %v185
    %v314 = vpack.c.b16 %v194, %v186
    %v315 = vpack.c.b16 %v195, %v187
    %v316 = vpack.c.b16 %v196, %v188
    %v317 = vpack.c.b16 %v205, %v197
    %v318 = vpack.c.b16 %v206, %v198
    %v319 = vpack.c.b16 %v207, %v199
    %v320 = vpack.c.b16 %v208, %v200
    %v321 = vpack.c.b16 %v209, %v201
    %v322 = vpack.c.b16 %v210, %v202
    %v323 = vpack.c.b16 %v211, %v203
    %v324 = vpack.c.b16 %v212, %v204
    %v325 = vpack.c.b16 %v221, %v213
    %v326 = vpack.c.b16 %v222, %v214
    %v327 = vpack.c.b16 %v223, %v215
    %v328 = vpack.c.b16 %v224, %v216
    %v329 = vpack.c.b16 %v225, %v217
    %v330 = vpack.c.b16 %v226, %v218
    %v331 = vpack.c.b16 %v227, %v219
    %v332 = vpack.c.b16 %v228, %v220
    %v333 = vpack.c.b16 %v237, %v229
    %v334 = vpack.c.b16 %v238, %v230
    %v335 = vpack.c.b16 %v239, %v231
    %v336 = vpack.c.b16 %v240, %v232
    %v337 = vpack.c.b16 %v241, %v233
    %v338 = vpack.c.b16 %v242, %v234
    %v339 = vpack.c.b16 %v243, %v235
    %v340 = vpack.c.b16 %v244, %v236
    %v341 = vpack.c.b16 %v253, %v245
    %v342 = vpack.c.b16 %v254, %v246
    %v343 = vpack.c.b16 %v255, %v247
    %v344 = vpack.c.b16 %v256, %v248
    %v345 = vpack.c.b16 %v257, %v249
    %v346 = vpack.c.b16 %v258, %v250
    %v347 = vpack.c.b16 %v259, %v251
    %v348 = vpack.c.b16 %v260, %v252
    %v349 = vpack.c.b16 %v269, %v261
    %v350 = vpack.c.b16 %v270, %v262
    %v351 = vpack.c.b16 %v271, %v263
    %v352 = vpack.c.b16 %v272, %v264
    %v353 = vpack.c.b16 %v273, %v265
    %v354 = vpack.c.b16 %v274, %v266
    %v355 = vpack.c.b16 %v275, %v267
    %v356 = vpack.c.b16 %v276, %v268
    %v357 = vpack.c.b16 %v285, %v277
    %v358 = vpack.c.b16 %v286, %v278
    %v359 = vpack.c.b16 %v287, %v279
    %v360 = vpack.c.b16 %v288, %v280
    %v361 = vpack.c.b16 %v289, %v281
    %v362 = vpack.c.b16 %v290, %v282
    %v363 = vpack.c.b16 %v291, %v283
    %v364 = vpack.c.b16 %v292, %v284
    %v365 = vpack.c.b16 %v301, %v293
    %v366 = vpack.c.b16 %v302, %v294
    %v367 = vpack.c.b16 %v303, %v295
    %v368 = vpack.c.b16 %v304, %v296
    %v369 = vpack.c.b16 %v305, %v297
    %v370 = vpack.c.b16 %v306, %v298
    %v371 = vpack.c.b16 %v307, %v299
    %v372 = vpack.c.b16 %v308, %v300
    %437 = vmatpush.bf16.msra.mxu0 %v365
    %438 = vmatpush.bf16.msra.mxu0 %v357
    %439 = vmatpush.bf16.msra.mxu0 %v349
    %440 = vmatpush.bf16.msra.mxu0 %v341
    %441 = vmatpush.bf16.msra.mxu0 %v333
    %442 = vmatpush.bf16.msra.mxu0 %v325
    %443 = vmatpush.bf16.msra.mxu0 %v317
    %444 = vmatpush.bf16.msra.mxu0 %v309
    %445 = vmatmul.bf16.gmra.mxu0 %v34
    %v446 = vpop.f32.mrf.mxu0
    %v447 = vadd.f32 %v101, %v446
    %v448 = vpop.f32.mrf.mxu0
    %449 = vdwg.mxu0
    %450 = vmatpush.bf16.msra.mxu0 %v366
    %451 = vmatpush.bf16.msra.mxu0 %v358
    %452 = vmatpush.bf16.msra.mxu0 %v350
    %453 = vmatpush.bf16.msra.mxu0 %v342
    %454 = vmatpush.bf16.msra.mxu0 %v334
    %455 = vmatpush.bf16.msra.mxu0 %v326
    %456 = vmatpush.bf16.msra.mxu0 %v318
    %457 = vmatpush.bf16.msra.mxu0 %v310
    %458 = vmatmul.bf16.gmra.mxu0 %v34
    %v459 = vpop.f32.mrf.mxu0
    %v460 = vadd.f32 %v102, %v459
    %v461 = vpop.f32.mrf.mxu0
    %462 = vdwg.mxu0
    %463 = vmatpush.bf16.msra.mxu0 %v367
    %464 = vmatpush.bf16.msra.mxu0 %v359
    %465 = vmatpush.bf16.msra.mxu0 %v351
    %466 = vmatpush.bf16.msra.mxu0 %v343
    %467 = vmatpush.bf16.msra.mxu0 %v335
    %468 = vmatpush.bf16.msra.mxu0 %v327
    %469 = vmatpush.bf16.msra.mxu0 %v319
    %470 = vmatpush.bf16.msra.mxu0 %v311
    %471 = vmatmul.bf16.gmra.mxu0 %v34
    %v472 = vpop.f32.mrf.mxu0
    %v473 = vadd.f32 %v103, %v472
    %v474 = vpop.f32.mrf.mxu0
    %475 = vdwg.mxu0
    %476 = vmatpush.bf16.msra.mxu0 %v368
    %477 = vmatpush.bf16.msra.mxu0 %v360
    %478 = vmatpush.bf16.msra.mxu0 %v352
    %479 = vmatpush.bf16.msra.mxu0 %v344
    %480 = vmatpush.bf16.msra.mxu0 %v336
    %481 = vmatpush.bf16.msra.mxu0 %v328
    %482 = vmatpush.bf16.msra.mxu0 %v320
    %483 = vmatpush.bf16.msra.mxu0 %v312
    %484 = vmatmul.bf16.gmra.mxu0 %v34
    %v485 = vpop.f32.mrf.mxu0
    %v486 = vadd.f32 %v104, %v485
    %v487 = vpop.f32.mrf.mxu0
    %488 = vdwg.mxu0
    %489 = vmatpush.bf16.msra.mxu0 %v369
    %490 = vmatpush.bf16.msra.mxu0 %v361
    %491 = vmatpush.bf16.msra.mxu0 %v353
    %492 = vmatpush.bf16.msra.mxu0 %v345
    %493 = vmatpush.bf16.msra.mxu0 %v337
    %494 = vmatpush.bf16.msra.mxu0 %v329
    %495 = vmatpush.bf16.msra.mxu0 %v321
    %496 = vmatpush.bf16.msra.mxu0 %v313
    %497 = vmatmul.bf16.gmra.mxu0 %v34
    %v498 = vpop.f32.mrf.mxu0
    %v499 = vadd.f32 %v105, %v498
    %v500 = vpop.f32.mrf.mxu0
    %501 = vdwg.mxu0
    %502 = vmatpush.bf16.msra.mxu0 %v370
    %503 = vmatpush.bf16.msra.mxu0 %v362
    %504 = vmatpush.bf16.msra.mxu0 %v354
    %505 = vmatpush.bf16.msra.mxu0 %v346
    %506 = vmatpush.bf16.msra.mxu0 %v338
    %507 = vmatpush.bf16.msra.mxu0 %v330
    %508 = vmatpush.bf16.msra.mxu0 %v322
    %509 = vmatpush.bf16.msra.mxu0 %v314
    %510 = vmatmul.bf16.gmra.mxu0 %v34
    %v511 = vpop.f32.mrf.mxu0
    %v512 = vadd.f32 %v106, %v511
    %v513 = vpop.f32.mrf.mxu0
    %514 = vdwg.mxu0
    %515 = vmatpush.bf16.msra.mxu0 %v371
    %516 = vmatpush.bf16.msra.mxu0 %v363
    %517 = vmatpush.bf16.msra.mxu0 %v355
    %518 = vmatpush.bf16.msra.mxu0 %v347
    %519 = vmatpush.bf16.msra.mxu0 %v339
    %520 = vmatpush.bf16.msra.mxu0 %v331
    %521 = vmatpush.bf16.msra.mxu0 %v323
    %522 = vmatpush.bf16.msra.mxu0 %v315
    %523 = vmatmul.bf16.gmra.mxu0 %v34
    %v524 = vpop.f32.mrf.mxu0
    %v525 = vadd.f32 %v107, %v524
    %v526 = vpop.f32.mrf.mxu0
    %527 = vdwg.mxu0
    %528 = vmatpush.bf16.msra.mxu0 %v372
    %529 = vmatpush.bf16.msra.mxu0 %v364
    %530 = vmatpush.bf16.msra.mxu0 %v356
    %531 = vmatpush.bf16.msra.mxu0 %v348
    %532 = vmatpush.bf16.msra.mxu0 %v340
    %533 = vmatpush.bf16.msra.mxu0 %v332
    %534 = vmatpush.bf16.msra.mxu0 %v324
    %535 = vmatpush.bf16.msra.mxu0 %v316
    %536 = vmatmul.bf16.gmra.mxu0 %v34
    %v537 = vpop.f32.mrf.mxu0
    %v538 = vadd.f32 %v108, %v537
    %v539 = vpop.f32.mrf.mxu0
    %540 = vdwg.mxu0
    %v541 = vmul.f32 %v447, %v460
    %v542 = vmul.f32 %v541, %v473
    %v543 = vmul.f32 %v542, %v486
    %v544 = vmul.f32 %v499, %v512
    %v545 = vmul.f32 %v544, %v525
    %v546 = vmul.f32 %v545, %v538
    %v547 = vmul.f32 %v546, %v543
    %v548 = vld [vmem:[%s3] sm:$0xff]
    %v549 = vld [vmem:[%s3 + $0x8] sm:$0xff]
    %v550 = vld [vmem:[%s3 + $0x10] sm:$0xff]
    %v551 = vld [vmem:[%s3 + $0x18] sm:$0xff]
    %v552 = vld [vmem:[%s3 + $0x20] sm:$0xff]
    %v553 = vld [vmem:[%s3 + $0x28] sm:$0xff]
    %v554 = vld [vmem:[%s3 + $0x30] sm:$0xff]
    %v555 = vld [vmem:[%s3 + $0x38] sm:$0xff]
    %v556 = vld [vmem:[%s3 + $0x40] sm:$0xff]
    %v557 = vld [vmem:[%s3 + $0x48] sm:$0xff]
    %v558 = vld [vmem:[%s3 + $0x50] sm:$0xff]
    %v559 = vld [vmem:[%s3 + $0x58] sm:$0xff]
    %v560 = vld [vmem:[%s3 + $0x60] sm:$0xff]
    %v561 = vld [vmem:[%s3 + $0x68] sm:$0xff]
    %v562 = vld [vmem:[%s3 + $0x70] sm:$0xff]
    %v563 = vld [vmem:[%s3 + $0x78] sm:$0xff]
    %v564 = vld [vmem:[%s3 + $0x80] sm:$0xff]
    %v565 = vld [vmem:[%s3 + $0x88] sm:$0xff]
    %v566 = vld [vmem:[%s3 + $0x90] sm:$0xff]
    %v567 = vld [vmem:[%s3 + $0x98] sm:$0xff]
    %v568 = vld [vmem:[%s3 + $0xa0] sm:$0xff]
    %v569 = vld [vmem:[%s3 + $0xa8] sm:$0xff]
    %v570 = vld [vmem:[%s3 + $0xb0] sm:$0xff]
    %v571 = vld [vmem:[%s3 + $0xb8] sm:$0xff]
    %v572 = vld [vmem:[%s3 + $0xc0] sm:$0xff]
    %v573 = vld [vmem:[%s3 + $0xc8] sm:$0xff]
    %v574 = vld [vmem:[%s3 + $0xd0] sm:$0xff]
    %v575 = vld [vmem:[%s3 + $0xd8] sm:$0xff]
    %v576 = vld [vmem:[%s3 + $0xe0] sm:$0xff]
    %v577 = vld [vmem:[%s3 + $0xe8] sm:$0xff]
    %v578 = vld [vmem:[%s3 + $0xf0] sm:$0xff]
    %v579 = vld [vmem:[%s3 + $0xf8] sm:$0xff]
    %580 = vmatpush.msra.mxu0 %v563
    %581 = vmatpush.msra.mxu0 %v562
    %582 = vmatpush.msra.mxu0 %v561
    %583 = vmatpush.msra.mxu0 %v560
    %584 = vmatpush.msra.mxu0 %v559
    %585 = vmatpush.msra.mxu0 %v558
    %586 = vmatpush.msra.mxu0 %v557
    %587 = vmatpush.msra.mxu0 %v556
    %588 = vmatpush.msra.mxu0 %v555
    %589 = vmatpush.msra.mxu0 %v554
    %590 = vmatpush.msra.mxu0 %v553
    %591 = vmatpush.msra.mxu0 %v552
    %592 = vmatpush.msra.mxu0 %v551
    %593 = vmatpush.msra.mxu0 %v550
    %594 = vmatpush.msra.mxu0 %v549
    %595 = vmatpush.msra.mxu0 %v548
    %596 = vmatmul.f32.gmra.mxu0 %v543
    %v597 = vpop.f32.mrf.mxu0
    %v598 = vadd.f32 0.0, %v597
    %599 = vdwg.mxu0
    %600 = vmatpush.msra.mxu0 %v579
    %601 = vmatpush.msra.mxu0 %v578
    %602 = vmatpush.msra.mxu0 %v577
    %603 = vmatpush.msra.mxu0 %v576
    %604 = vmatpush.msra.mxu0 %v575
    %605 = vmatpush.msra.mxu0 %v574
    %606 = vmatpush.msra.mxu0 %v573
    %607 = vmatpush.msra.mxu0 %v572
    %608 = vmatpush.msra.mxu0 %v571
    %609 = vmatpush.msra.mxu0 %v570
    %610 = vmatpush.msra.mxu0 %v569
    %611 = vmatpush.msra.mxu0 %v568
    %612 = vmatpush.msra.mxu0 %v567
    %613 = vmatpush.msra.mxu0 %v566
    %614 = vmatpush.msra.mxu0 %v565
    %615 = vmatpush.msra.mxu0 %v564
    %616 = vmatmul.f32.gmra.mxu0 %v547
    %v617 = vpop.f32.mrf.mxu0
    %v618 = vadd.f32 %v598, %v617
    %619 = vdwg.mxu0
    %vm620 = vcmp.ge.f32.partialorder %v618, 0.0
    %v621 = vsel %vm620, 1.0, -1.0
    %v622 = vand.u32 2147483647, %v618
    %v623 = vrsqrt.pop %v622
    %v624 = vmul.f32 %v623, %v622
    %v625 = vmul.f32 %v624, %v623
    %v626 = vmul.f32 0.5, %v625
    %v627 = vsub.f32 1.5, %v626
    %v628 = vmul.f32 %v623, %v627
    %v629 = vmul.f32 %v622, %v628
    %vm630 = vcmp.eq.f32.partialorder %v622, inf
    %v631 = vsel %vm630, %v622, %v629
    %vm632 = vcmp.eq.f32.partialorder %v622, 0.0
    %v633 = vand.u32 %v622, 2147483648
    %v634 = vsel %vm632, %v633, %v631
    %v635 = vmul.f32 %v621, %v634
    %v636 = vmul.f32 %v635, %v635
    %vm637 = vcmask 254976
    %v638 = vsel %vm637, %v636, 0.0
    %639 = vadd.xlane.f32.xlu0 %v638
    %v640 = vpop.xlane.xlu0 %639
    %v641 = vmax.f32 %v640, 1e-24
    %v642 = vrsqrt.pop %v641
    %v643 = vmul.f32 %v642, %v641
    %v644 = vmul.f32 %v643, %v642
    %v645 = vmul.f32 0.5, %v644
    %v646 = vsub.f32 1.5, %v645
    %v647 = vmul.f32 %v642, %v646
    %vm648 = vweird.f32 %v641
    %vm649 = vweird.f32 %v642
    %vm650 = vmor %vm648, %vm649
    %v651 = vsel %vm650, %v642, %v647
    %653 = vrot.lane.b32.xlu0 %v636, 96
    %v654 = vpop.permute.xlu0 %653
    %v656 = vsel %vm637, %v654, 0.0
    %657 = vadd.xlane.f32.xlu0 %v656
    %v658 = vpop.xlane.xlu0 %657
    %v659 = vmax.f32 %v658, 1e-24
    %v660 = vrsqrt.pop %v659
    %v661 = vmul.f32 %v660, %v659
    %v662 = vmul.f32 %v661, %v660
    %v663 = vmul.f32 0.5, %v662
    %v664 = vsub.f32 1.5, %v663
    %v665 = vmul.f32 %v660, %v664
    %vm666 = vweird.f32 %v659
    %vm667 = vweird.f32 %v660
    %vm668 = vmor %vm666, %vm667
    %v669 = vsel %vm668, %v660, %v665
    %v670 = vmul.f32 %v635, 8.0
    %v671 = vmul.f32 %v670, %v651
    %v672 = vmul.f32 %v635, %v669
    %674 = vrot.lane.b32.xlu0 %v672, 96
    %v675 = vpop.permute.xlu0 %674
    %v677 = vadd.f32 %v671, %v675
    %v678 = vmul.f32 %v677, 0.16666667
    %680 = vrot.lane.b32.xlu0 %v678, 32
    %v681 = vpop.permute.xlu0 %680
    %683 = vrot.lane.b32.xlu0 %v678, 64
    %v684 = vpop.permute.xlu0 %683
    %686 = vrot.lane.b32.xlu0 %v678, 96
    %v687 = vpop.permute.xlu0 %686
    %vm689 = vcmask 261120
    %v690 = vsel %vm689, %v678, %v681
    %vm691 = vcmask 523264
    %v692 = vsel %vm691, %v690, %v684
    %vm693 = vcmask 785408
    %v694 = vsel %vm693, %v692, %v687
    %695 = vst [vmem:[#allocation5] sm:$0x3] %v694
    // Predicated region
    $region22: #{res_emfh_apply.1} parent=1 // pred_check
      _
    $region23: #{res_emfh_apply.1} parent=1 // pred_check_branch
      %697 = sbr.rel (0) target = $region25
    $region24: #{res_emfh_apply.1} parent=1 // pred_region
      %699 = vsyncadd [#allocation4], 0
      %s701 = sshll.u32 [#allocation5], 4
      %s702 = int_to_ptr.vmem [resolvable:$true] %s701
      %s703 = sshll.u32 %s4, 4
      %s704 = int_to_ptr.hbm [resolvable:$true] %s703
      %706 = dma.vmem_to_hbm [thread:$0]  %s702, 32, %s704, [#allocation4]
    $region25: #{res_emfh_apply.1} parent=1 // pred_fallthru
      _
    // Predicated region
    $region26: #{res_emfh_apply.1} parent=1 // pred_check
      _
    $region27: #{res_emfh_apply.1} parent=1 // pred_check_branch
      %708 = sbr.rel (0) target = $region29
    $region28: #{res_emfh_apply.1} parent=1 // pred_region
      %710 = dma.done [#allocation4], 32
    $region29: #{res_emfh_apply.1} parent=1 // pred_fallthru
      _
    %711 = vsyncpa [#allocation3], 1
    %712 = vsyncpa [#allocation4], 1

</llo_original>
